<compile_context>
chip_gen: v7x
topology: tpu7x:2x2x1
jax: 0.10.0
libtpu: 0.0.40
codegen_flags: <defaults>
</compile_context>

<pallas_src>
import functools

import jax
import jax.numpy as jnp
from jax.experimental import pallas as pl
from jax.experimental.pallas import tpu as pltpu

LN_EPS = 1e-5   # PyTorch nn.LayerNorm default


def _round_up(x, m):
    return (x + m - 1) // m * m


def _layernorm(h, gamma, beta):
    # LayerNorm over last axis, biased variance (matches torch), f32 math.
    mean = jnp.mean(h, axis=-1, keepdims=True)
    centered = h - mean
    var = jnp.mean(centered * centered, axis=-1, keepdims=True)
    inv = jax.lax.rsqrt(var + LN_EPS)
    return centered * inv * gamma + beta


def mlp_kernel(x_ref, w1_ref, ln1_ref, w2_ref, ln2_ref, w3_ref, b3_ref, *out_refs):
    # out_refs = (logits_ref,) or (logits_ref, features_ref).
    # ln*_ref rows: [0]=linear bias, [1]=LN gamma, [2]=LN beta (all f32).
    logits_ref = out_refs[0]
    feat_ref = out_refs[1] if len(out_refs) > 1 else None

    ln1 = ln1_ref[...]
    ln2 = ln2_ref[...]

    # Cast x to the compute dtype inside the kernel (no extra HBM pass).
    x = x_ref[...].astype(w1_ref.dtype)

    # fc1 -> LayerNorm -> ReLU   (dropout p=0 is the identity)
    h = jnp.dot(x, w1_ref[...], preferred_element_type=jnp.float32)
    h = h + ln1[0:1, :]
    h = _layernorm(h, ln1[1:2, :], ln1[2:3, :])
    h = jnp.maximum(h, 0.0)

    # fc2 -> LayerNorm -> ReLU
    h = jnp.dot(h.astype(w2_ref.dtype), w2_ref[...], preferred_element_type=jnp.float32)
    h = h + ln2[0:1, :]
    h = _layernorm(h, ln2[1:2, :], ln2[2:3, :])
    h = jnp.maximum(h, 0.0)

    if feat_ref is not None:           # t-SNE feature export
        feat_ref[...] = h.astype(feat_ref.dtype)

    # fc3 -> narrow logits block (num_class lanes)
    logits = jnp.dot(h.astype(w3_ref.dtype), w3_ref[...], preferred_element_type=jnp.float32)
    logits = logits + b3_ref[...]
    logits_ref[...] = logits.astype(logits_ref.dtype)


def prepare_params(params, compute_dtype=jnp.bfloat16):
    """One-time conversion from PyTorch layout to kernel layout.

    * Linear weights transposed to [in, out] (hoisted out of the per-call path).
    * (bias, gamma, beta) stacked into one [3, dim] f32 block per LayerNorm.
    * bf16 weights by default: the kernel is HBM-bound, dots accumulate in f32
      and LayerNorm math stays in f32, so bf16 halves weight DMA bytes.
    """
    return {
        "w1": params["w1"].T.astype(compute_dtype),
        "ln1": jnp.stack([params["b1"], params["g1"], params["be1"]]).astype(jnp.float32),
        "w2": params["w2"].T.astype(compute_dtype),
        "ln2": jnp.stack([params["b2"], params["g2"], params["be2"]]).astype(jnp.float32),
        "w3": params["w3"].T.astype(compute_dtype),
        "b3": params["b3"].reshape(1, -1).astype(jnp.float32),
    }


def _vmem_budget_bytes():
    # Generation-aware budget: ~40% of per-core physical VMEM, capped so the
    # working set + compiler scratch stays inside a 32 MiB scoped limit.
    # v5e/v6e (128 MiB) -> 26 MiB; v7x (64 MiB per TC) -> ~25 MiB.
    cap = 128 << 20
    try:
        info = pltpu.get_tpu_info()
        cap = int(getattr(info, "vmem_capacity_bytes", cap))
    except Exception:
        pass
    return min(int(cap * 0.4), 26 << 20)


@functools.partial(jax.jit, static_argnames=("block_rows", "need_tsne_data"))
def mlp_forward(x, kparams, block_rows=1024, need_tsne_data=False):
    """x: [B, inputs_dim]. kparams: output of prepare_params()."""
    B, d_in = x.shape
    w1, ln1, w2 = kparams["w1"], kparams["ln1"], kparams["w2"]
    ln2, w3, b3 = kparams["ln2"], kparams["w3"], kparams["b3"]
    hid = w1.shape[1]
    out_dim = w2.shape[1]
    num_class = w3.shape[1]
    out_dtype = x.dtype
    w_item = jnp.dtype(w1.dtype).itemsize
    x_item = jnp.dtype(x.dtype).itemsize

    # Per-batch-row VMEM: double-buffered x / logits (/ features) tiles plus
    # f32 intermediates kept live inside the kernel.
    row_bytes = (2 * x_item * d_in
                 + 2 * jnp.dtype(out_dtype).itemsize * num_class
                 + 4 * (hid + out_dim + num_class))
    if need_tsne_data:
        row_bytes += 2 * 4 * out_dim
    # Resident weights / LN params, counted at 2x: BlockSpec pipelining
    # double-buffers every input by default (pl.Buffered(1) would halve this;
    # the conservative count keeps tb safe on every generation incl. v7x).
    weight_bytes = 2 * ((w1.size + w2.size + w3.size) * w_item
                        + 4 * (ln1.size + ln2.size + b3.size))

    budget = _vmem_budget_bytes()
    fit_rows = max(8, int((budget - weight_bytes) // row_bytes))
    tb = max(8, min((fit_rows // 8) * 8, block_rows, _round_up(B, 8)))
    # Keep >= 2 grid steps when the batch allows it so the "parallel" batch
    # axis can shard across both TensorCores on v7x (no-op on v5e/v6e).
    if B > 8:
        tb = max(8, min(tb, _round_up(pl.cdiv(B, 2), 8)))

    grid = (pl.cdiv(B, tb),)   # partial tail tile handled by Pallas masking

    working_bytes = weight_bytes + tb * row_bytes
    vmem_limit = int(min(32 << 20, max(2 * working_bytes, 16 << 20)))

    resident = lambda shape: pl.BlockSpec(shape, lambda i: (0, 0))

    out_shapes = [jax.ShapeDtypeStruct((B, num_class), out_dtype)]
    out_specs = [pl.BlockSpec((tb, num_class), lambda i: (i, 0))]
    if need_tsne_data:
        out_shapes.append(jax.ShapeDtypeStruct((B, out_dim), jnp.float32))
        out_specs.append(pl.BlockSpec((tb, out_dim), lambda i: (i, 0)))

    outs = pl.pallas_call(
        mlp_kernel,
        out_shape=tuple(out_shapes),
        grid=grid,
        in_specs=[
            pl.BlockSpec((tb, d_in), lambda i: (i, 0)),   # x: pipelined over batch
            resident((d_in, hid)),                        # w1
            resident((3, hid)),                           # b1 / gamma1 / beta1
            resident((hid, out_dim)),                     # w2
            resident((3, out_dim)),                       # b2 / gamma2 / beta2
            resident((out_dim, num_class)),               # w3
            resident((1, num_class)),                     # b3
        ],
        out_specs=tuple(out_specs),
        compiler_params=pltpu.CompilerParams(
            dimension_semantics=("parallel",),            # megacore on v7x
            vmem_limit_bytes=vmem_limit),
    )(x, w1, ln1, w2, ln2, w3, b3)

    logits = outs[0]
    features = outs[1] if need_tsne_data else None
    return logits, features


def init_params(key, inputs_dim, hidden_dim, outputs_dim, num_class):
    """Deterministic synthetic init (PyTorch nn.Linear-style uniform bounds)."""
    ks = jax.random.split(key, 6)

    def linear(kw, kb, fan_in, fan_out):
        bound = 1.0 / jnp.sqrt(fan_in)
        w = jax.random.uniform(kw, (fan_out, fan_in), jnp.float32, -bound, bound)
        b = jax.random.uniform(kb, (fan_out,), jnp.float32, -bound, bound)
        return w, b

    w1, b1 = linear(ks[0], ks[1], inputs_dim, hidden_dim)
    w2, b2 = linear(ks[2], ks[3], hidden_dim, outputs_dim)
    w3, b3 = linear(ks[4], ks[5], outputs_dim, num_class)
    return {
        "w1": w1, "b1": b1,
        "g1": jnp.ones((hidden_dim,), jnp.float32),
        "be1": jnp.zeros((hidden_dim,), jnp.float32),
        "w2": w2, "b2": b2,
        "g2": jnp.ones((outputs_dim,), jnp.float32),
        "be2": jnp.zeros((outputs_dim,), jnp.float32),
        "w3": w3, "b3": b3,
    }


def reference_forward(x, params):
    """Plain-JAX reference (mirrors the PyTorch MLP forward)."""
    h = x @ params["w1"].T + params["b1"]
    mean = h.mean(-1, keepdims=True)
    var = ((h - mean) ** 2).mean(-1, keepdims=True)
    h = (h - mean) / jnp.sqrt(var + LN_EPS) * params["g1"] + params["be1"]
    h = jnp.maximum(h, 0.0)
    h = h @ params["w2"].T + params["b2"]
    mean = h.mean(-1, keepdims=True)
    var = ((h - mean) ** 2).mean(-1, keepdims=True)
    h = (h - mean) / jnp.sqrt(var + LN_EPS) * params["g2"] + params["be2"]
    h = jnp.maximum(h, 0.0)
    feat = h
    return h @ params["w3"].T + params["b3"], feat


if __name__ == "__main__":
    B, INPUTS_DIM, HIDDEN_DIM, OUTPUTS_DIM, NUM_CLASS = 8, 32, 64, 32, 4

    key = jax.random.PRNGKey(0)
    kx, kp = jax.random.split(key)
    x = jax.random.normal(kx, (B, INPUTS_DIM), dtype=jnp.float32)
    params = init_params(kp, INPUTS_DIM, HIDDEN_DIM, OUTPUTS_DIM, NUM_CLASS)
    ref_logits, ref_feat = reference_forward(x, params)

    # f32 compute path: tight numeric check + t-SNE feature export.
    kp_f32 = prepare_params(params, compute_dtype=jnp.float32)
    logits, features = mlp_forward(x, kp_f32, need_tsne_data=True)
    logits, features = jax.block_until_ready((logits, features))
    assert logits.shape == (B, NUM_CLASS)
    assert features.shape == (B, OUTPUTS_DIM)
    assert jnp.allclose(logits, ref_logits, atol=1e-4, rtol=1e-4)
    assert jnp.allclose(features, ref_feat, atol=1e-4, rtol=1e-4)

    # Non-multiple-of-tile batch: masked partial tail tile, no wrapper pad/cast.
    x_big = jax.random.normal(kx, (37, INPUTS_DIM), dtype=jnp.float32)
    logits_big, _ = mlp_forward(x_big, kp_f32)
    logits_big = jax.block_until_ready(logits_big)
    ref_big, _ = reference_forward(x_big, params)
    assert logits_big.shape == (37, NUM_CLASS)
    assert jnp.allclose(logits_big, ref_big, atol=1e-4, rtol=1e-4)

    # bf16 weights (default compute dtype): tolerance-tested vs f32 reference.
    kp_bf16 = prepare_params(params)
    logits_bf16, _ = mlp_forward(x, kp_bf16)
    logits_bf16 = jax.block_until_ready(logits_bf16)
    assert logits_bf16.shape == (B, NUM_CLASS)
    assert bool(jnp.all(jnp.isfinite(logits_bf16)))
    assert jnp.allclose(logits_bf16.astype(jnp.float32), ref_logits, atol=2e-1, rtol=2e-1)

    print("KERNEL_OK")
</pallas_src>

<mosaic_0001>
module attributes {stable_mosaic.version = 11 : i64} {
  func.func @mlp_kernel(%arg0: i32, %arg1: memref<8x32xf32, #tpu.memory_space<vmem>>, %arg2: memref<32x64xf32, #tpu.memory_space<vmem>>, %arg3: memref<3x64xf32, #tpu.memory_space<vmem>>, %arg4: memref<64x32xf32, #tpu.memory_space<vmem>>, %arg5: memref<3x32xf32, #tpu.memory_space<vmem>>, %arg6: memref<32x4xf32, #tpu.memory_space<vmem>>, %arg7: memref<1x4xf32, #tpu.memory_space<vmem>>, %arg8: memref<8x4xf32, #tpu.memory_space<vmem>>, %arg9: memref<8x32xf32, #tpu.memory_space<vmem>>) attributes {dimension_semantics = [#tpu.dimension_semantics<parallel>], iteration_bounds = array<i64: 1>, scalar_prefetch = 0 : i64, scratch_operands = 0 : i64, tpu.core_type = #tpu.core_type<tc>, window_params = [{transform_indices = @transform_0, window_bounds = array<i64: 8, 32>}, {pipeline_mode = #tpu.pipeline_mode<synchronous>, transform_indices = @transform_1, window_bounds = array<i64: 32, 64>}, {pipeline_mode = #tpu.pipeline_mode<synchronous>, transform_indices = @transform_2, window_bounds = array<i64: 3, 64>}, {pipeline_mode = #tpu.pipeline_mode<synchronous>, transform_indices = @transform_3, window_bounds = array<i64: 64, 32>}, {pipeline_mode = #tpu.pipeline_mode<synchronous>, transform_indices = @transform_4, window_bounds = array<i64: 3, 32>}, {pipeline_mode = #tpu.pipeline_mode<synchronous>, transform_indices = @transform_5, window_bounds = array<i64: 32, 4>}, {pipeline_mode = #tpu.pipeline_mode<synchronous>, transform_indices = @transform_6, window_bounds = array<i64: 1, 4>}, {transform_indices = @transform_7, window_bounds = array<i64: 8, 4>}, {transform_indices = @transform_8, window_bounds = array<i64: 8, 32>}]} {
    %c0 = arith.constant 0 : index
    %c0_0 = arith.constant 0 : index
    %0 = vector.load %arg3[%c0, %c0_0] : memref<3x64xf32, #tpu.memory_space<vmem>>, vector<3x64xf32>
    %c0_1 = arith.constant 0 : index
    %c0_2 = arith.constant 0 : index
    %1 = vector.load %arg5[%c0_1, %c0_2] : memref<3x32xf32, #tpu.memory_space<vmem>>, vector<3x32xf32>
    %c0_3 = arith.constant 0 : index
    %c0_4 = arith.constant 0 : index
    %2 = vector.load %arg1[%c0_3, %c0_4] : memref<8x32xf32, #tpu.memory_space<vmem>>, vector<8x32xf32>
    %c0_5 = arith.constant 0 : index
    %c0_6 = arith.constant 0 : index
    %3 = vector.load %arg2[%c0_5, %c0_6] : memref<32x64xf32, #tpu.memory_space<vmem>>, vector<32x64xf32>
    %cst = arith.constant dense<0.000000e+00> : vector<8x64xf32>
    %4 = tpu.matmul %2, %3, %cst {dimension_numbers = #tpu.dot_dimension_numbers<[1], [0], [0], [1], [0, 0, 1, 1], [], []>} : vector<8x32xf32>, vector<32x64xf32>, vector<8x64xf32> -> vector<8x64xf32>
    %5 = vector.extract_strided_slice %0 {offsets = [0, 0], sizes = [1, 64], strides = [1, 1]} : vector<3x64xf32> to vector<1x64xf32>
    %6 = vector.broadcast %5 : vector<1x64xf32> to vector<8x64xf32>
    %7 = arith.addf %4, %6 : vector<8x64xf32>
    %8 = vector.extract_strided_slice %0 {offsets = [1, 0], sizes = [1, 64], strides = [1, 1]} : vector<3x64xf32> to vector<1x64xf32>
    %9 = vector.extract_strided_slice %0 {offsets = [2, 0], sizes = [1, 64], strides = [1, 1]} : vector<3x64xf32> to vector<1x64xf32>
    %cst_7 = arith.constant dense<0.000000e+00> : vector<8xf32>
    %10 = vector.multi_reduction <add>, %7, %cst_7 [1] : vector<8x64xf32> to vector<8xf32>
    %11 = vector.shape_cast %10 : vector<8xf32> to vector<8x1xf32>
    %cst_8 = arith.constant 6.400000e+01 : f32
    %12 = vector.broadcast %cst_8 : f32 to vector<8x1xf32>
    %13 = arith.divf %11, %12 : vector<8x1xf32>
    %14 = vector.broadcast %13 : vector<8x1xf32> to vector<8x64xf32>
    %15 = arith.subf %7, %14 : vector<8x64xf32>
    %16 = arith.mulf %15, %15 : vector<8x64xf32>
    %cst_9 = arith.constant dense<0.000000e+00> : vector<8xf32>
    %17 = vector.multi_reduction <add>, %16, %cst_9 [1] : vector<8x64xf32> to vector<8xf32>
    %18 = vector.shape_cast %17 : vector<8xf32> to vector<8x1xf32>
    %cst_10 = arith.constant 6.400000e+01 : f32
    %19 = vector.broadcast %cst_10 : f32 to vector<8x1xf32>
    %20 = arith.divf %18, %19 : vector<8x1xf32>
    %cst_11 = arith.constant 9.99999974E-6 : f32
    %21 = vector.broadcast %cst_11 : f32 to vector<8x1xf32>
    %22 = arith.addf %20, %21 : vector<8x1xf32>
    %23 = math.rsqrt %22 : vector<8x1xf32>
    %24 = vector.broadcast %23 : vector<8x1xf32> to vector<8x64xf32>
    %25 = arith.mulf %15, %24 : vector<8x64xf32>
    %26 = vector.broadcast %8 : vector<1x64xf32> to vector<8x64xf32>
    %27 = arith.mulf %25, %26 : vector<8x64xf32>
    %28 = vector.broadcast %9 : vector<1x64xf32> to vector<8x64xf32>
    %29 = arith.addf %27, %28 : vector<8x64xf32>
    %cst_12 = arith.constant 0.000000e+00 : f32
    %30 = vector.broadcast %cst_12 : f32 to vector<8x64xf32>
    %31 = arith.maximumf %29, %30 : vector<8x64xf32>
    %c0_13 = arith.constant 0 : index
    %c0_14 = arith.constant 0 : index
    %32 = vector.load %arg4[%c0_13, %c0_14] : memref<64x32xf32, #tpu.memory_space<vmem>>, vector<64x32xf32>
    %cst_15 = arith.constant dense<0.000000e+00> : vector<8x32xf32>
    %33 = tpu.matmul %31, %32, %cst_15 {dimension_numbers = #tpu.dot_dimension_numbers<[1], [0], [0], [1], [0, 0, 1, 1], [], []>} : vector<8x64xf32>, vector<64x32xf32>, vector<8x32xf32> -> vector<8x32xf32>
    %34 = vector.extract_strided_slice %1 {offsets = [0, 0], sizes = [1, 32], strides = [1, 1]} : vector<3x32xf32> to vector<1x32xf32>
    %35 = vector.broadcast %34 : vector<1x32xf32> to vector<8x32xf32>
    %36 = arith.addf %33, %35 : vector<8x32xf32>
    %37 = vector.extract_strided_slice %1 {offsets = [1, 0], sizes = [1, 32], strides = [1, 1]} : vector<3x32xf32> to vector<1x32xf32>
    %38 = vector.extract_strided_slice %1 {offsets = [2, 0], sizes = [1, 32], strides = [1, 1]} : vector<3x32xf32> to vector<1x32xf32>
    %cst_16 = arith.constant dense<0.000000e+00> : vector<8xf32>
    %39 = vector.multi_reduction <add>, %36, %cst_16 [1] : vector<8x32xf32> to vector<8xf32>
    %40 = vector.shape_cast %39 : vector<8xf32> to vector<8x1xf32>
    %cst_17 = arith.constant 3.200000e+01 : f32
    %41 = vector.broadcast %cst_17 : f32 to vector<8x1xf32>
    %42 = arith.divf %40, %41 : vector<8x1xf32>
    %43 = vector.broadcast %42 : vector<8x1xf32> to vector<8x32xf32>
    %44 = arith.subf %36, %43 : vector<8x32xf32>
    %45 = arith.mulf %44, %44 : vector<8x32xf32>
    %cst_18 = arith.constant dense<0.000000e+00> : vector<8xf32>
    %46 = vector.multi_reduction <add>, %45, %cst_18 [1] : vector<8x32xf32> to vector<8xf32>
    %47 = vector.shape_cast %46 : vector<8xf32> to vector<8x1xf32>
    %cst_19 = arith.constant 3.200000e+01 : f32
    %48 = vector.broadcast %cst_19 : f32 to vector<8x1xf32>
    %49 = arith.divf %47, %48 : vector<8x1xf32>
    %cst_20 = arith.constant 9.99999974E-6 : f32
    %50 = vector.broadcast %cst_20 : f32 to vector<8x1xf32>
    %51 = arith.addf %49, %50 : vector<8x1xf32>
    %52 = math.rsqrt %51 : vector<8x1xf32>
    %53 = vector.broadcast %52 : vector<8x1xf32> to vector<8x32xf32>
    %54 = arith.mulf %44, %53 : vector<8x32xf32>
    %55 = vector.broadcast %37 : vector<1x32xf32> to vector<8x32xf32>
    %56 = arith.mulf %54, %55 : vector<8x32xf32>
    %57 = vector.broadcast %38 : vector<1x32xf32> to vector<8x32xf32>
    %58 = arith.addf %56, %57 : vector<8x32xf32>
    %cst_21 = arith.constant 0.000000e+00 : f32
    %59 = vector.broadcast %cst_21 : f32 to vector<8x32xf32>
    %60 = arith.maximumf %58, %59 : vector<8x32xf32>
    %c0_22 = arith.constant 0 : index
    %c0_23 = arith.constant 0 : index
    %61 = vector.load %arg9[%c0_22, %c0_23] : memref<8x32xf32, #tpu.memory_space<vmem>>, vector<8x32xf32>
    tpu.vector_store %arg9[%c0_22, %c0_23], %60 {strides = array<i32>} : memref<8x32xf32, #tpu.memory_space<vmem>>, vector<8x32xf32>,
    %c0_24 = arith.constant 0 : index
    %c0_25 = arith.constant 0 : index
    %62 = vector.load %arg6[%c0_24, %c0_25] : memref<32x4xf32, #tpu.memory_space<vmem>>, vector<32x4xf32>
    %cst_26 = arith.constant dense<0.000000e+00> : vector<8x4xf32>
    %63 = tpu.matmul %60, %62, %cst_26 {dimension_numbers = #tpu.dot_dimension_numbers<[1], [0], [0], [1], [0, 0, 1, 1], [], []>} : vector<8x32xf32>, vector<32x4xf32>, vector<8x4xf32> -> vector<8x4xf32>
    %c0_27 = arith.constant 0 : index
    %c0_28 = arith.constant 0 : index
    %64 = vector.load %arg7[%c0_27, %c0_28] : memref<1x4xf32, #tpu.memory_space<vmem>>, vector<1x4xf32>
    %65 = vector.broadcast %64 : vector<1x4xf32> to vector<8x4xf32>
    %66 = arith.addf %63, %65 : vector<8x4xf32>
    %c0_29 = arith.constant 0 : index
    %c0_30 = arith.constant 0 : index
    %67 = vector.load %arg8[%c0_29, %c0_30] : memref<8x4xf32, #tpu.memory_space<vmem>>, vector<8x4xf32>
    tpu.vector_store %arg8[%c0_29, %c0_30], %66 {strides = array<i32>} : memref<8x4xf32, #tpu.memory_space<vmem>>, vector<8x4xf32>,
    return
  }
  func.func @transform_0(%arg0: i32) -> (i32, i32) {
    %c0_i32 = arith.constant 0 : i32
    %c0_i32_0 = arith.constant 0 : i32
    return %arg0, %c0_i32 : i32, i32
  }
  func.func @transform_1(%arg0: i32) -> (i32, i32) {
    %c0_i32 = arith.constant 0 : i32
    %c0_i32_0 = arith.constant 0 : i32
    %c0_i32_1 = arith.constant 0 : i32
    return %c0_i32, %c0_i32_0 : i32, i32
  }
  func.func @transform_2(%arg0: i32) -> (i32, i32) {
    %c0_i32 = arith.constant 0 : i32
    %c0_i32_0 = arith.constant 0 : i32
    %c0_i32_1 = arith.constant 0 : i32
    return %c0_i32, %c0_i32_0 : i32, i32
  }
  func.func @transform_3(%arg0: i32) -> (i32, i32) {
    %c0_i32 = arith.constant 0 : i32
    %c0_i32_0 = arith.constant 0 : i32
    %c0_i32_1 = arith.constant 0 : i32
    return %c0_i32, %c0_i32_0 : i32, i32
  }
  func.func @transform_4(%arg0: i32) -> (i32, i32) {
    %c0_i32 = arith.constant 0 : i32
    %c0_i32_0 = arith.constant 0 : i32
    %c0_i32_1 = arith.constant 0 : i32
    return %c0_i32, %c0_i32_0 : i32, i32
  }
  func.func @transform_5(%arg0: i32) -> (i32, i32) {
    %c0_i32 = arith.constant 0 : i32
    %c0_i32_0 = arith.constant 0 : i32
    %c0_i32_1 = arith.constant 0 : i32
    return %c0_i32, %c0_i32_0 : i32, i32
  }
  func.func @transform_6(%arg0: i32) -> (i32, i32) {
    %c0_i32 = arith.constant 0 : i32
    %c0_i32_0 = arith.constant 0 : i32
    %c0_i32_1 = arith.constant 0 : i32
    return %c0_i32, %c0_i32_0 : i32, i32
  }
  func.func @transform_7(%arg0: i32) -> (i32, i32) {
    %c0_i32 = arith.constant 0 : i32
    %c0_i32_0 = arith.constant 0 : i32
    return %arg0, %c0_i32 : i32, i32
  }
  func.func @transform_8(%arg0: i32) -> (i32, i32) {
    %c0_i32 = arith.constant 0 : i32
    %c0_i32_0 = arith.constant 0 : i32
    return %arg0, %c0_i32 : i32, i32
  }
}

</mosaic_0001>

<llo_original>
// kernel: mlp_forward.1
$region0: #{mlp_forward.1}
  #allocation0 [shape = 'u32[]', space=smem, size = 0x4, offset = 0x4, fixed_abs, tag = 'smem constant byte address 0x4 - core index']
  #allocation1 [shape = 'u32[144,128]{1,0:T(1,128)}', space=vmem, size = 0x12000, scoped, tag = 'internal scratch']
  %s0 = inlined_call_operand.vmem [shape: f32[8,32], index: 0, kind: input, shape index: {}]
  %s1 = inlined_call_operand.vmem [shape: f32[32,64], index: 1, kind: input, shape index: {}]
  %s2 = inlined_call_operand.vmem [shape: f32[3,64], index: 2, kind: input, shape index: {}]
  %s3 = inlined_call_operand.vmem [shape: f32[64,32], index: 3, kind: input, shape index: {}]
  %s4 = inlined_call_operand.vmem [shape: f32[3,32], index: 4, kind: input, shape index: {}]
  %s5 = inlined_call_operand.vmem [shape: f32[32,4], index: 5, kind: input, shape index: {}]
  %s6 = inlined_call_operand.vmem [shape: f32[1,4], index: 6, kind: input, shape index: {}]
  %s7 = inlined_call_operand.vmem [shape: f32[8,4], index: 7, kind: output, shape index: {0}]
  %s8 = inlined_call_operand.hbm [shape: f32[8,32], index: 8, kind: output, shape index: {1}]
  %9 = xla_tuple %s7, %s8
  %s10 = sld [smem:[#allocation0]]
  $region46: #{mlp_forward.1} parent=0
    _
  %s12 = ssub.s32 1, %s10
  %s13 = scalar_select 0, %s12, %s10
  $region1: #{mlp_forward.1} parent=0
    #allocation2 [shape = 'u8[4096]{0}', space=vmem, size = 0x1000, scoped, tag = 'output window, operand 1, single buffered']
    #allocation3 [shape = 's32[1]{0}', space=sflag, size = 0x4, scoped, tag = 'scoped memory for mlp_forward.1']
    %14 = vsyncpa [#allocation3], 0
    // Predicated region
    $region2: #{mlp_forward.1} parent=1 // pred_check
      _
    $region3: #{mlp_forward.1} parent=1 // pred_check_branch
      %16 = sbr.rel (0) target = $region5
    $region4: #{mlp_forward.1} parent=1 // pred_region
      _
    $region5: #{mlp_forward.1} parent=1 // pred_fallthru
      _
    // Predicated region
    $region6: #{mlp_forward.1} parent=1 // pred_check
      _
    $region7: #{mlp_forward.1} parent=1 // pred_check_branch
      %18 = sbr.rel (0) target = $region9
    $region8: #{mlp_forward.1} parent=1 // pred_region
      _
    $region9: #{mlp_forward.1} parent=1 // pred_fallthru
      _
    // Predicated region
    $region10: #{mlp_forward.1} parent=1 // pred_check
      _
    $region11: #{mlp_forward.1} parent=1 // pred_check_branch
      %20 = sbr.rel (0) target = $region13
    $region12: #{mlp_forward.1} parent=1 // pred_region
      _
    $region13: #{mlp_forward.1} parent=1 // pred_fallthru
      _
    // Predicated region
    $region14: #{mlp_forward.1} parent=1 // pred_check
      _
    $region15: #{mlp_forward.1} parent=1 // pred_check_branch
      %22 = sbr.rel (0) target = $region17
    $region16: #{mlp_forward.1} parent=1 // pred_region
      _
    $region17: #{mlp_forward.1} parent=1 // pred_fallthru
      _
    // Predicated region
    $region18: #{mlp_forward.1} parent=1 // pred_check
      _
    $region19: #{mlp_forward.1} parent=1 // pred_check_branch
      %24 = sbr.rel (0) target = $region21
    $region20: #{mlp_forward.1} parent=1 // pred_region
      _
    $region21: #{mlp_forward.1} parent=1 // pred_fallthru
      _
    // Predicated region
    $region22: #{mlp_forward.1} parent=1 // pred_check
      _
    $region23: #{mlp_forward.1} parent=1 // pred_check_branch
      %26 = sbr.rel (0) target = $region25
    $region24: #{mlp_forward.1} parent=1 // pred_region
      _
    $region25: #{mlp_forward.1} parent=1 // pred_fallthru
      _
    // Predicated region
    $region26: #{mlp_forward.1} parent=1 // pred_check
      _
    $region27: #{mlp_forward.1} parent=1 // pred_check_branch
      %28 = sbr.rel (0) target = $region29
    $region28: #{mlp_forward.1} parent=1 // pred_region
      _
    $region29: #{mlp_forward.1} parent=1 // pred_fallthru
      _
    %v29 = vld [vmem:[%s2] sm:$0x7]
    %v30 = vld [vmem:[%s4] sm:$0x7]
    %v31 = vld [vmem:[%s0] sm:$0xff]
    %v32 = vld [vmem:[%s1] sm:$0xff]
    %v33 = vld [vmem:[%s1 + $0x8] sm:$0xff]
    %v34 = vld [vmem:[%s1 + $0x10] sm:$0xff]
    %v35 = vld [vmem:[%s1 + $0x18] sm:$0xff]
    %v36 = vlaneseq
    %v37 = vshrl.u32 %v36, 7
    %v38 = vsub.s32 0, %v37
    %v39 = vrot.slane %v29, %v38
    %vm40 = vcmask 261120
    %v42 = vsel %vm40, %v31, 0
    %44 = vmatprep.subr.mxu0 0.0
    %45 = vmatpush1.msra.mxu0 %v32
    %46 = vmatprep.subr.mxu0 0.0
    %47 = vmatpush1.msra.mxu0 %v33
    %48 = vmatprep.subr.mxu0 0.0
    %49 = vmatpush1.msra.mxu0 %v34
    %50 = vmatprep.subr.mxu0 0.0
    %51 = vmatpush1.msra.mxu0 %v35
    %52 = vmatprep.subr.mxu0 0.0
    %53 = vmatpush1.msra.mxu0 0.0
    %54 = vmatprep.subr.mxu0 0.0
    %55 = vmatpush1.msra.mxu0 0.0
    %56 = vmatprep.subr.mxu0 0.0
    %57 = vmatpush1.msra.mxu0 0.0
    %58 = vmatprep.subr.mxu0 0.0
    %59 = vmatpush1.msra.mxu0 0.0
    %60 = vmatprep.subr.mxu0 0.0
    %61 = vmatpush1.msra.mxu0 0.0
    %62 = vmatprep.subr.mxu0 0.0
    %63 = vmatpush1.msra.mxu0 0.0
    %64 = vmatprep.subr.mxu0 0.0
    %65 = vmatpush1.msra.mxu0 0.0
    %66 = vmatprep.subr.mxu0 0.0
    %67 = vmatpush1.msra.mxu0 0.0
    %68 = vmatprep.subr.mxu0 0.0
    %69 = vmatpush1.msra.mxu0 0.0
    %70 = vmatprep.subr.mxu0 0.0
    %71 = vmatpush1.msra.mxu0 0.0
    %72 = vmatprep.subr.mxu0 0.0
    %73 = vmatpush1.msra.mxu0 0.0
    %74 = vmatprep.subr.mxu0 0.0
    %75 = vmatpush1.msra.mxu0 0.0
    %76 = vmatprep.subr.mxu0 0.0
    %77 = vmatpush1.msra.mxu0 0.0
    %78 = vmatprep.subr.mxu0 0.0
    %79 = vmatpush1.msra.mxu0 0.0
    %80 = vmatprep.subr.mxu0 0.0
    %81 = vmatpush1.msra.mxu0 0.0
    %82 = vmatprep.subr.mxu0 0.0
    %83 = vmatpush1.msra.mxu0 0.0
    %84 = vmatprep.subr.mxu0 0.0
    %85 = vmatpush1.msra.mxu0 0.0
    %86 = vmatprep.subr.mxu0 0.0
    %87 = vmatpush1.msra.mxu0 0.0
    %88 = vmatprep.subr.mxu0 0.0
    %89 = vmatpush1.msra.mxu0 0.0
    %90 = vmatprep.subr.mxu0 0.0
    %91 = vmatpush1.msra.mxu0 0.0
    %92 = vmatprep.subr.mxu0 0.0
    %93 = vmatpush1.msra.mxu0 0.0
    %94 = vmatprep.subr.mxu0 0.0
    %95 = vmatpush1.msra.mxu0 0.0
    %96 = vmatprep.subr.mxu0 0.0
    %97 = vmatpush1.msra.mxu0 0.0
    %98 = vmatprep.subr.mxu0 0.0
    %99 = vmatpush1.msra.mxu0 0.0
    %100 = vmatprep.subr.mxu0 0.0
    %101 = vmatpush1.msra.mxu0 0.0
    %102 = vmatprep.subr.mxu0 0.0
    %103 = vmatpush1.msra.mxu0 0.0
    %104 = vmatprep.subr.mxu0 0.0
    %105 = vmatpush1.msra.mxu0 0.0
    %106 = vmatprep.subr.mxu0 0.0
    %107 = vmatpush1.msra.mxu0 0.0
    %108 = vmatprep.mubr.f32.mxu0 0.0
    %109 = vmatmul.mubr.f32.gmra.mrb[0].mxu0 %v42
    %v110 = vpop.f32.mrb[0].mxu0
    %v111 = vadd.f32 %v39, %v110
    %v112 = vpop.f32.mrb[0].mxu0
    %113 = vdwg.mxu0
    %vm114 = vcmask 523264
    %v115 = vsel %vm114, %v111, 0.0
    %116 = vadd.xlane.f32.xlu0 %v115
    %v117 = vpop.xlane.xlu0 %116
    %v118 = vrcp.pop 64.0
    %v119 = vmul.f32 %v117, %v118
    %v120 = vsub.f32 %v111, %v119
    %v121 = vmul.f32 %v120, %v120
    %v122 = vsel %vm114, %v121, 0.0
    %123 = vadd.xlane.f32.xlu0 %v122
    %v124 = vpop.xlane.xlu0 %123
    %v125 = vmul.f32 %v124, %v118
    %v126 = vadd.f32 %v125, 1e-05
    %v127 = vrsqrt.pop %v126
    %v128 = vmul.f32 %v120, %v127
    %v129 = vlaneseq
    %v130 = vshrl.u32 %v129, 7
    %v131 = vsub.s32 1, %v130
    %v132 = vrot.slane %v29, %v131
    %v133 = vmul.f32 %v128, %v132
    %v134 = vlaneseq
    %v135 = vshrl.u32 %v134, 7
    %v136 = vsub.s32 2, %v135
    %v137 = vrot.slane %v29, %v136
    %v138 = vadd.f32 %v133, %v137
    %v139 = vmax.f32 %v138, 0.0
    %v140 = vld [vmem:[%s3] sm:$0xff]
    %v141 = vld [vmem:[%s3 + $0x8] sm:$0xff]
    %v142 = vld [vmem:[%s3 + $0x10] sm:$0xff]
    %v143 = vld [vmem:[%s3 + $0x18] sm:$0xff]
    %v144 = vld [vmem:[%s3 + $0x20] sm:$0xff]
    %v145 = vld [vmem:[%s3 + $0x28] sm:$0xff]
    %v146 = vld [vmem:[%s3 + $0x30] sm:$0xff]
    %v147 = vld [vmem:[%s3 + $0x38] sm:$0xff]
    %v148 = vlaneseq
    %v149 = vshrl.u32 %v148, 7
    %v150 = vsub.s32 0, %v149
    %v151 = vrot.slane %v30, %v150
    %v153 = vsel %vm114, %v139, 0
    %155 = vmatprep.subr.mxu0 0.0
    %156 = vmatpush1.msra.mxu0 %v140
    %157 = vmatprep.subr.mxu0 0.0
    %158 = vmatpush1.msra.mxu0 %v141
    %159 = vmatprep.subr.mxu0 0.0
    %160 = vmatpush1.msra.mxu0 %v142
    %161 = vmatprep.subr.mxu0 0.0
    %162 = vmatpush1.msra.mxu0 %v143
    %163 = vmatprep.subr.mxu0 0.0
    %164 = vmatpush1.msra.mxu0 %v144
    %165 = vmatprep.subr.mxu0 0.0
    %166 = vmatpush1.msra.mxu0 %v145
    %167 = vmatprep.subr.mxu0 0.0
    %168 = vmatpush1.msra.mxu0 %v146
    %169 = vmatprep.subr.mxu0 0.0
    %170 = vmatpush1.msra.mxu0 %v147
    %171 = vmatprep.subr.mxu0 0.0
    %172 = vmatpush1.msra.mxu0 0.0
    %173 = vmatprep.subr.mxu0 0.0
    %174 = vmatpush1.msra.mxu0 0.0
    %175 = vmatprep.subr.mxu0 0.0
    %176 = vmatpush1.msra.mxu0 0.0
    %177 = vmatprep.subr.mxu0 0.0
    %178 = vmatpush1.msra.mxu0 0.0
    %179 = vmatprep.subr.mxu0 0.0
    %180 = vmatpush1.msra.mxu0 0.0
    %181 = vmatprep.subr.mxu0 0.0
    %182 = vmatpush1.msra.mxu0 0.0
    %183 = vmatprep.subr.mxu0 0.0
    %184 = vmatpush1.msra.mxu0 0.0
    %185 = vmatprep.subr.mxu0 0.0
    %186 = vmatpush1.msra.mxu0 0.0
    %187 = vmatprep.subr.mxu0 0.0
    %188 = vmatpush1.msra.mxu0 0.0
    %189 = vmatprep.subr.mxu0 0.0
    %190 = vmatpush1.msra.mxu0 0.0
    %191 = vmatprep.subr.mxu0 0.0
    %192 = vmatpush1.msra.mxu0 0.0
    %193 = vmatprep.subr.mxu0 0.0
    %194 = vmatpush1.msra.mxu0 0.0
    %195 = vmatprep.subr.mxu0 0.0
    %196 = vmatpush1.msra.mxu0 0.0
    %197 = vmatprep.subr.mxu0 0.0
    %198 = vmatpush1.msra.mxu0 0.0
    %199 = vmatprep.subr.mxu0 0.0
    %200 = vmatpush1.msra.mxu0 0.0
    %201 = vmatprep.subr.mxu0 0.0
    %202 = vmatpush1.msra.mxu0 0.0
    %203 = vmatprep.subr.mxu0 0.0
    %204 = vmatpush1.msra.mxu0 0.0
    %205 = vmatprep.subr.mxu0 0.0
    %206 = vmatpush1.msra.mxu0 0.0
    %207 = vmatprep.subr.mxu0 0.0
    %208 = vmatpush1.msra.mxu0 0.0
    %209 = vmatprep.subr.mxu0 0.0
    %210 = vmatpush1.msra.mxu0 0.0
    %211 = vmatprep.subr.mxu0 0.0
    %212 = vmatpush1.msra.mxu0 0.0
    %213 = vmatprep.subr.mxu0 0.0
    %214 = vmatpush1.msra.mxu0 0.0
    %215 = vmatprep.subr.mxu0 0.0
    %216 = vmatpush1.msra.mxu0 0.0
    %217 = vmatprep.subr.mxu0 0.0
    %218 = vmatpush1.msra.mxu0 0.0
    %219 = vmatprep.mubr.f32.mxu0 0.0
    %220 = vmatmul.mubr.f32.gmra.mrb[0].mxu0 %v153
    %v221 = vpop.f32.mrb[0].mxu0
    %v222 = vadd.f32 %v151, %v221
    %v223 = vpop.f32.mrb[0].mxu0
    %224 = vdwg.mxu0
    %v225 = vsel %vm40, %v222, 0.0
    %226 = vadd.xlane.f32.xlu0 %v225
    %v227 = vpop.xlane.xlu0 %226
    %v228 = vrcp.pop 32.0
    %v229 = vmul.f32 %v227, %v228
    %v230 = vsub.f32 %v222, %v229
    %v231 = vmul.f32 %v230, %v230
    %v232 = vsel %vm40, %v231, 0.0
    %233 = vadd.xlane.f32.xlu0 %v232
    %v234 = vpop.xlane.xlu0 %233
    %v235 = vmul.f32 %v234, %v228
    %v236 = vadd.f32 %v235, 1e-05
    %v237 = vrsqrt.pop %v236
    %v238 = vmul.f32 %v230, %v237
    %v239 = vlaneseq
    %v240 = vshrl.u32 %v239, 7
    %v241 = vsub.s32 1, %v240
    %v242 = vrot.slane %v30, %v241
    %v243 = vmul.f32 %v238, %v242
    %v244 = vlaneseq
    %v245 = vshrl.u32 %v244, 7
    %v246 = vsub.s32 2, %v245
    %v247 = vrot.slane %v30, %v246
    %v248 = vadd.f32 %v243, %v247
    %v249 = vmax.f32 %v248, 0.0
    %250 = vst.msk [vmem:[#allocation2] sm:$0xff] %vm40, %v249
    %v251 = vld [vmem:[%s5] sm:$0xff]
    %v252 = vld [vmem:[%s5 + $0x8] sm:$0xff]
    %v253 = vld [vmem:[%s5 + $0x10] sm:$0xff]
    %v254 = vld [vmem:[%s5 + $0x18] sm:$0xff]
    %v255 = vld [vmem:[%s6] sm:$0x1]
    %v257 = vlaneseq
    %v258 = vshrl.u32 %v257, 7
    %v259 = vsub.s32 0, %v258
    %v260 = vrot.slane %v255, %v259
    %v263 = vsel %vm40, %v249, 0
    %265 = vmatprep.subr.mxu0 0.0
    %266 = vmatpush1.msra.mxu0 %v251
    %267 = vmatprep.subr.mxu0 0.0
    %268 = vmatpush1.msra.mxu0 %v252
    %269 = vmatprep.subr.mxu0 0.0
    %270 = vmatpush1.msra.mxu0 %v253
    %271 = vmatprep.subr.mxu0 0.0
    %272 = vmatpush1.msra.mxu0 %v254
    %273 = vmatprep.subr.mxu0 0.0
    %274 = vmatpush1.msra.mxu0 0.0
    %275 = vmatprep.subr.mxu0 0.0
    %276 = vmatpush1.msra.mxu0 0.0
    %277 = vmatprep.subr.mxu0 0.0
    %278 = vmatpush1.msra.mxu0 0.0
    %279 = vmatprep.subr.mxu0 0.0
    %280 = vmatpush1.msra.mxu0 0.0
    %281 = vmatprep.subr.mxu0 0.0
    %282 = vmatpush1.msra.mxu0 0.0
    %283 = vmatprep.subr.mxu0 0.0
    %284 = vmatpush1.msra.mxu0 0.0
    %285 = vmatprep.subr.mxu0 0.0
    %286 = vmatpush1.msra.mxu0 0.0
    %287 = vmatprep.subr.mxu0 0.0
    %288 = vmatpush1.msra.mxu0 0.0
    %289 = vmatprep.subr.mxu0 0.0
    %290 = vmatpush1.msra.mxu0 0.0
    %291 = vmatprep.subr.mxu0 0.0
    %292 = vmatpush1.msra.mxu0 0.0
    %293 = vmatprep.subr.mxu0 0.0
    %294 = vmatpush1.msra.mxu0 0.0
    %295 = vmatprep.subr.mxu0 0.0
    %296 = vmatpush1.msra.mxu0 0.0
    %297 = vmatprep.subr.mxu0 0.0
    %298 = vmatpush1.msra.mxu0 0.0
    %299 = vmatprep.subr.mxu0 0.0
    %300 = vmatpush1.msra.mxu0 0.0
    %301 = vmatprep.subr.mxu0 0.0
    %302 = vmatpush1.msra.mxu0 0.0
    %303 = vmatprep.subr.mxu0 0.0
    %304 = vmatpush1.msra.mxu0 0.0
    %305 = vmatprep.subr.mxu0 0.0
    %306 = vmatpush1.msra.mxu0 0.0
    %307 = vmatprep.subr.mxu0 0.0
    %308 = vmatpush1.msra.mxu0 0.0
    %309 = vmatprep.subr.mxu0 0.0
    %310 = vmatpush1.msra.mxu0 0.0
    %311 = vmatprep.subr.mxu0 0.0
    %312 = vmatpush1.msra.mxu0 0.0
    %313 = vmatprep.subr.mxu0 0.0
    %314 = vmatpush1.msra.mxu0 0.0
    %315 = vmatprep.subr.mxu0 0.0
    %316 = vmatpush1.msra.mxu0 0.0
    %317 = vmatprep.subr.mxu0 0.0
    %318 = vmatpush1.msra.mxu0 0.0
    %319 = vmatprep.subr.mxu0 0.0
    %320 = vmatpush1.msra.mxu0 0.0
    %321 = vmatprep.subr.mxu0 0.0
    %322 = vmatpush1.msra.mxu0 0.0
    %323 = vmatprep.subr.mxu0 0.0
    %324 = vmatpush1.msra.mxu0 0.0
    %325 = vmatprep.subr.mxu0 0.0
    %326 = vmatpush1.msra.mxu0 0.0
    %327 = vmatprep.subr.mxu0 0.0
    %328 = vmatpush1.msra.mxu0 0.0
    %329 = vmatprep.mubr.f32.mxu0 0.0
    %330 = vmatmul.mubr.f32.gmra.mrb[0].mxu0 %v263
    %v331 = vpop.f32.mrb[0].mxu0
    %v332 = vadd.f32 %v260, %v331
    %v333 = vpop.f32.mrb[0].mxu0
    %334 = vdwg.mxu0
    %vm335 = vcmask 31744
    %336 = vst.msk [vmem:[%s7] sm:$0xff] %vm335, %v332
    // Predicated region
    $region30: #{mlp_forward.1} parent=1 // pred_check
      _
    $region31: #{mlp_forward.1} parent=1 // pred_check_branch
      %338 = sbr.rel (0) target = $region33
    $region32: #{mlp_forward.1} parent=1 // pred_region
      _
    $region33: #{mlp_forward.1} parent=1 // pred_fallthru
      _
    // Predicated region
    $region34: #{mlp_forward.1} parent=1 // pred_check
      _
    $region35: #{mlp_forward.1} parent=1 // pred_check_branch
      %340 = sbr.rel (0) target = $region37
    $region36: #{mlp_forward.1} parent=1 // pred_region
      %s342 = ssub.s32 128, 128
      %343 = vsyncadd [#allocation3], %s342
      %s345 = sshll.u32 [#allocation2], 4
      %s346 = int_to_ptr.vmem [resolvable:$true] %s345
      %348 = dma.vmem_to_hbm [thread:$0]  %s346, 128, %s8, [#allocation3]
    $region37: #{mlp_forward.1} parent=1 // pred_fallthru
      _
    // Predicated region
    $region38: #{mlp_forward.1} parent=1 // pred_check
      _
    $region39: #{mlp_forward.1} parent=1 // pred_check_branch
      %350 = sbr.rel (0) target = $region41
    $region40: #{mlp_forward.1} parent=1 // pred_region
      _
    $region41: #{mlp_forward.1} parent=1 // pred_fallthru
      _
    // Predicated region
    $region42: #{mlp_forward.1} parent=1 // pred_check
      _
    $region43: #{mlp_forward.1} parent=1 // pred_check_branch
      %352 = sbr.rel (0) target = $region45
    $region44: #{mlp_forward.1} parent=1 // pred_region
      %353 = dma.done [#allocation3], 128
    $region45: #{mlp_forward.1} parent=1 // pred_fallthru
      _
    %354 = vsyncpa [#allocation3], 1

</llo_original>
